<compile_context>
chip_gen: v5e
topology: v5e:2x2
jax: 0.10.0
libtpu: 0.0.40
codegen_flags: <defaults>
</compile_context>

<pallas_src>
import functools
import math

import jax
import jax.numpy as jnp
import numpy as np
from jax.experimental import pallas as pl
from jax.experimental.pallas import tpu as pltpu

_LANE = 128
_SUB = 8
_CHUNK = _LANE * _SUB  # 1024 elements = one (8, 128) f32 vreg worth


def _partial_sqdiff_kernel(yhat_ref, y_ref, out_ref, *, rows):
    """Per-tile sum of squared differences reduced to an (8, 128) f32 partial."""
    i = pl.program_id(0)
    tm = yhat_ref.shape[0]

    d = yhat_ref[...].astype(jnp.float32) - y_ref[...].astype(jnp.float32)

    # Mask rows of the (possibly) overhanging last tile.  Static check: this
    # code is only emitted when the grid does not evenly divide `rows`.
    # Masking happens BEFORE the multiply so OOB garbage (even NaN) is killed.
    if rows % tm != 0:
        row_ids = i * tm + jax.lax.broadcasted_iota(jnp.int32, (tm, _LANE), 0)
        d = jnp.where(row_ids < rows, d, jnp.float32(0.0))

    d2 = d * d
    # (tm, 128) -> (tm//8, 8, 128) follows the native sublane tiling; summing
    # over axis 0 is a chain of whole-vreg VPU adds (no per-step XLU reduce).
    out_ref[0] = d2.reshape(tm // _SUB, _SUB, _LANE).sum(axis=0)


def rmse_loss(yhat, y, eps=1e-6):
    assert yhat.shape == y.shape, "yhat and y must have identical shapes"
    total = math.prod(yhat.shape)

    yh = yhat.reshape(-1)
    yy = y.reshape(-1)

    n_main = (total // _CHUNK) * _CHUNK
    tail_sq = jnp.float32(0.0)
    if n_main == 0:
        # Whole tensor smaller than one (8,128) chunk: tiny zero-pad (adds 0).
        pad = _CHUNK - total
        yh_main = jnp.pad(yh, (0, pad))
        yy_main = jnp.pad(yy, (0, pad))
        n_main = _CHUNK
    else:
        yh_main = yh[:n_main]
        yy_main = yy[:n_main]
        if n_main != total:
            # Ragged tail (< 1024 elems) in plain JAX: avoids a full-tensor
            # jnp.pad copy just to round the size up.
            dt = yh[n_main:].astype(jnp.float32) - yy[n_main:].astype(jnp.float32)
            tail_sq = jnp.sum(dt * dt)

    rows = n_main // _LANE  # always a multiple of 8
    yh2 = yh_main.reshape(rows, _LANE)
    yy2 = yy_main.reshape(rows, _LANE)

    itemsize_a = np.dtype(yh2.dtype).itemsize
    itemsize_b = np.dtype(yy2.dtype).itemsize
    itemsize = max(itemsize_a, itemsize_b)
    # ~2 MiB per input per pipeline buffer (4096 rows for f32, 8192 for bf16).
    # 2 inputs x 2 buffers x 2 MiB = 8 MiB VMEM -> fits default scoped limit
    # on every chip; DMA time per step (~3 us) dwarfs the ~0.35 us step cost.
    tm_target = max(_SUB, ((2 << 20) // (_LANE * itemsize)) // _SUB * _SUB)
    tm = min(rows, tm_target)  # multiple of 8
    nb = pl.cdiv(rows, tm)

    partials = pl.pallas_call(
        functools.partial(_partial_sqdiff_kernel, rows=rows),
        out_shape=jax.ShapeDtypeStruct((nb, _SUB, _LANE), jnp.float32),
        grid_spec=pltpu.PrefetchScalarGridSpec(
            num_scalar_prefetch=0,
            grid=(nb,),
            in_specs=[
                pl.BlockSpec((tm, _LANE), lambda i: (i, 0)),
                pl.BlockSpec((tm, _LANE), lambda i: (i, 0)),
            ],
            out_specs=pl.BlockSpec((1, _SUB, _LANE), lambda i: (i, 0, 0)),
        ),
        compiler_params=pltpu.CompilerParams(
            dimension_semantics=("parallel",),
        ),
        cost_estimate=pl.CostEstimate(
            flops=3 * n_main,
            transcendentals=0,
            bytes_accessed=n_main * (itemsize_a + itemsize_b)
            + nb * _SUB * _LANE * 4,
        ),
    )(yh2, yy2)

    # Tiny epilogue: one cross-lane reduce over nb*1024 f32 partials + sqrt.
    sq_sum = jnp.sum(partials) + tail_sq
    return jnp.sqrt(sq_sum / jnp.float32(total) + jnp.float32(eps))


if __name__ == "__main__":
    key = jax.random.PRNGKey(0)
    k1, k2 = jax.random.split(key)

    # Small shape consistent with a typical (B, C, H, W) prediction tensor.
    shape = (2, 4, 16, 16)
    yhat = jax.random.normal(k1, shape, dtype=jnp.float32)
    y = jax.random.normal(k2, shape, dtype=jnp.float32)

    loss = jax.block_until_ready(rmse_loss(yhat, y, eps=1e-6))
    ref = jnp.sqrt(jnp.mean((yhat - y) ** 2) + 1e-6)
    np.testing.assert_allclose(np.asarray(loss), np.asarray(ref), rtol=1e-5, atol=1e-6)

    # Ragged size (2100 elements) exercising the plain-JAX tail path.
    k3, k4 = jax.random.split(k2)
    yhat2 = jax.random.normal(k3, (7, 300), dtype=jnp.float32)
    y2 = jax.random.normal(k4, (7, 300), dtype=jnp.float32)
    loss2 = jax.block_until_ready(rmse_loss(yhat2, y2, eps=1e-6))
    ref2 = jnp.sqrt(jnp.mean((yhat2 - y2) ** 2) + 1e-6)
    np.testing.assert_allclose(np.asarray(loss2), np.asarray(ref2), rtol=1e-5, atol=1e-6)

    # Moderate size exercising the multi-block grid + in-kernel row mask + tail.
    k5, k6 = jax.random.split(k4)
    yhat3 = jax.random.normal(k5, (600, 1200), dtype=jnp.float32)
    y3 = jax.random.normal(k6, (600, 1200), dtype=jnp.float32)
    loss3 = jax.block_until_ready(rmse_loss(yhat3, y3, eps=1e-6))
    ref3 = jnp.sqrt(jnp.mean((yhat3 - y3) ** 2) + 1e-6)
    np.testing.assert_allclose(np.asarray(loss3), np.asarray(ref3), rtol=1e-4, atol=1e-6)

    print("KERNEL_OK")
</pallas_src>

<mosaic_0001>
module attributes {stable_mosaic.version = 11 : i64} {
  func.func @_partial_sqdiff_kernel(%arg0: i32, %arg1: memref<16x128xf32, #tpu.memory_space<vmem>>, %arg2: memref<16x128xf32, #tpu.memory_space<vmem>>, %arg3: memref<1x8x128xf32, #tpu.memory_space<vmem>>) attributes {dimension_semantics = [#tpu.dimension_semantics<parallel>], iteration_bounds = array<i64: 1>, scalar_prefetch = 0 : i64, scratch_operands = 0 : i64, tpu.core_type = #tpu.core_type<tc>, window_params = [{transform_indices = @transform_0, window_bounds = array<i64: 16, 128>}, {transform_indices = @transform_1, window_bounds = array<i64: 16, 128>}, {transform_indices = @transform_2, window_bounds = array<i64: 1, 8, 128>}]} {
    %c0 = arith.constant 0 : index
    %c0_0 = arith.constant 0 : index
    %0 = vector.load %arg1[%c0, %c0_0] : memref<16x128xf32, #tpu.memory_space<vmem>>, vector<16x128xf32>
    %c0_1 = arith.constant 0 : index
    %c0_2 = arith.constant 0 : index
    %1 = vector.load %arg2[%c0_1, %c0_2] : memref<16x128xf32, #tpu.memory_space<vmem>>, vector<16x128xf32>
    %2 = arith.subf %0, %1 : vector<16x128xf32>
    %3 = arith.mulf %2, %2 : vector<16x128xf32>
    %4 = vector.shape_cast %3 : vector<16x128xf32> to vector<2x8x128xf32>
    %cst = arith.constant dense<0.000000e+00> : vector<8x128xf32>
    %5 = vector.multi_reduction <add>, %4, %cst [0] : vector<2x8x128xf32> to vector<8x128xf32>
    %c0_3 = arith.constant 0 : index
    %c0_4 = arith.constant 0 : index
    %c0_5 = arith.constant 0 : index
    %6 = vector.load %arg3[%c0_3, %c0_4, %c0_5] : memref<1x8x128xf32, #tpu.memory_space<vmem>>, vector<1x8x128xf32>
    %7 = vector.shape_cast %6 : vector<1x8x128xf32> to vector<8x128xf32>
    %8 = vector.shape_cast %5 : vector<8x128xf32> to vector<1x8x128xf32>
    tpu.vector_store %arg3[%c0_3, %c0_4, %c0_5], %8 {strides = array<i32>} : memref<1x8x128xf32, #tpu.memory_space<vmem>>, vector<1x8x128xf32>,
    return
  }
  func.func @transform_0(%arg0: i32) -> (i32, i32) {
    %c0_i32 = arith.constant 0 : i32
    %c0_i32_0 = arith.constant 0 : i32
    return %arg0, %c0_i32 : i32, i32
  }
  func.func @transform_1(%arg0: i32) -> (i32, i32) {
    %c0_i32 = arith.constant 0 : i32
    %c0_i32_0 = arith.constant 0 : i32
    return %arg0, %c0_i32 : i32, i32
  }
  func.func @transform_2(%arg0: i32) -> (i32, i32, i32) {
    %c0_i32 = arith.constant 0 : i32
    %c0_i32_0 = arith.constant 0 : i32
    %c0_i32_1 = arith.constant 0 : i32
    return %arg0, %c0_i32, %c0_i32_0 : i32, i32, i32
  }
}

</mosaic_0001>

<llo_original>
// kernel: tpu_custom_call.1
$region0: #{tpu_custom_call.1}
  #allocation0 [shape = 'u32[]', space=smem, size = 0x4, offset = 0x4, fixed_abs, tag = 'smem constant byte address 0x4 - core index']
  #allocation1 [shape = 'u32[72,128]{1,0:T(1,128)}', space=vmem, size = 0x9000, scoped, tag = 'internal scratch']
  %s0 = inlined_call_operand.hbm [shape: f32[16,128], index: 0, kind: input, shape index: {}]
  %s1 = inlined_call_operand.hbm [shape: f32[16,128], index: 1, kind: input, shape index: {}]
  %s2 = inlined_call_operand.hbm [shape: f32[1,8,128], index: 2, kind: output, shape index: {}]
  %s3 = sld [smem:[#allocation0]]
  $region26: #{tpu_custom_call.1} parent=0
    _
  %s5 = ssub.s32 1, %s3
  %s6 = scalar_select 0, %s5, %s3
  $region1: #{tpu_custom_call.1} parent=0
    #allocation2 [shape = 'u8[8192]{0}', space=vmem, size = 0x2000, scoped, tag = 'input window, operand 0, single buffered']
    #allocation3 [shape = 's32[1]{0}', space=sflag, size = 0x4, scoped, tag = 'scoped memory for tpu_custom_call.1']
    #allocation4 [shape = 's32[1]{0}', space=sflag, size = 0x4, scoped, tag = 'scoped memory for tpu_custom_call.1']
    #allocation5 [shape = 'u8[8192]{0}', space=vmem, size = 0x2000, scoped, tag = 'input window, operand 1, single buffered']
    #allocation6 [shape = 's32[1]{0}', space=sflag, size = 0x4, scoped, tag = 'scoped memory for tpu_custom_call.1']
    #allocation7 [shape = 'u8[4096]{0}', space=vmem, size = 0x1000, scoped, tag = 'output window, operand 0, single buffered']
    %7 = vsyncpa [#allocation3], 0
    %8 = vsyncpa [#allocation6], 0
    %9 = vsyncpa [#allocation4], 0
    // Predicated region
    $region2: #{tpu_custom_call.1} parent=1 // pred_check
      _
    $region3: #{tpu_custom_call.1} parent=1 // pred_check_branch
      %11 = sbr.rel (0) target = $region5
    $region4: #{tpu_custom_call.1} parent=1 // pred_region
      %13 = vsyncadd [#allocation3], 0
      %s14 = sshll.u32 %s0, 4
      %s15 = int_to_ptr.hbm [resolvable:$true] %s14
      %s16 = sshll.u32 [#allocation2], 4
      %s17 = int_to_ptr.vmem [resolvable:$true] %s16
      %22 = dma.hbm_to_vmem [thread:$0]  %s15, 256, %s17, [#allocation3], 128, 128, 8
    $region5: #{tpu_custom_call.1} parent=1 // pred_fallthru
      _
    // Predicated region
    $region6: #{tpu_custom_call.1} parent=1 // pred_check
      _
    $region7: #{tpu_custom_call.1} parent=1 // pred_check_branch
      %24 = sbr.rel (0) target = $region9
    $region8: #{tpu_custom_call.1} parent=1 // pred_region
      %26 = vsyncadd [#allocation6], 0
      %s27 = sshll.u32 %s1, 4
      %s28 = int_to_ptr.hbm [resolvable:$true] %s27
      %s29 = sshll.u32 [#allocation5], 4
      %s30 = int_to_ptr.vmem [resolvable:$true] %s29
      %35 = dma.hbm_to_vmem [thread:$0]  %s28, 256, %s30, [#allocation6], 128, 128, 8
    $region9: #{tpu_custom_call.1} parent=1 // pred_fallthru
      _
    // Predicated region
    $region10: #{tpu_custom_call.1} parent=1 // pred_check
      _
    $region11: #{tpu_custom_call.1} parent=1 // pred_check_branch
      %37 = sbr.rel (0) target = $region13
    $region12: #{tpu_custom_call.1} parent=1 // pred_region
      %39 = dma.done [#allocation3], 256
    $region13: #{tpu_custom_call.1} parent=1 // pred_fallthru
      _
    // Predicated region
    $region14: #{tpu_custom_call.1} parent=1 // pred_check
      _
    $region15: #{tpu_custom_call.1} parent=1 // pred_check_branch
      %41 = sbr.rel (0) target = $region17
    $region16: #{tpu_custom_call.1} parent=1 // pred_region
      %43 = dma.done [#allocation6], 256
    $region17: #{tpu_custom_call.1} parent=1 // pred_fallthru
      _
    %v44 = vld [vmem:[#allocation2] sm:$0xff]
    %v45 = vld [vmem:[#allocation2 + $0x8] sm:$0xff]
    %v46 = vld [vmem:[#allocation5] sm:$0xff]
    %v47 = vld [vmem:[#allocation5 + $0x8] sm:$0xff]
    %v48 = vsub.f32 %v44, %v46
    %v49 = vsub.f32 %v45, %v47
    %v50 = vmul.f32 %v48, %v48
    %v51 = vmul.f32 %v49, %v49
    %v52 = vadd.f32 %v50, %v51
    %53 = vst [vmem:[#allocation7] sm:$0xff] %v52
    // Predicated region
    $region18: #{tpu_custom_call.1} parent=1 // pred_check
      _
    $region19: #{tpu_custom_call.1} parent=1 // pred_check_branch
      %55 = sbr.rel (0) target = $region21
    $region20: #{tpu_custom_call.1} parent=1 // pred_region
      %57 = vsyncadd [#allocation4], 0
      %s59 = sshll.u32 [#allocation7], 4
      %s60 = int_to_ptr.vmem [resolvable:$true] %s59
      %s61 = sshll.u32 %s2, 4
      %s62 = int_to_ptr.hbm [resolvable:$true] %s61
      %64 = dma.vmem_to_hbm [thread:$0]  %s60, 128, %s62, [#allocation4]
    $region21: #{tpu_custom_call.1} parent=1 // pred_fallthru
      _
    // Predicated region
    $region22: #{tpu_custom_call.1} parent=1 // pred_check
      _
    $region23: #{tpu_custom_call.1} parent=1 // pred_check_branch
      %66 = sbr.rel (0) target = $region25
    $region24: #{tpu_custom_call.1} parent=1 // pred_region
      %68 = dma.done [#allocation4], 128
    $region25: #{tpu_custom_call.1} parent=1 // pred_fallthru
      _
    %69 = vsyncpa [#allocation3], 1
    %70 = vsyncpa [#allocation6], 1
    %71 = vsyncpa [#allocation4], 1

</llo_original>
